<compile_context>
chip_gen: v7x
topology: tpu7x:2x2x1
jax: 0.10.0
libtpu: 0.0.40
codegen_flags: <defaults>
</compile_context>

<pallas_src>
import jax
import jax.numpy as jnp
from jax.experimental import pallas as pl
from jax.experimental.pallas import tpu as pltpu

ACTION_VALUES = 3
HIDDEN = 128


def _round_up(n, m):
    return (n + m - 1) // m * m


def dqn_kernel(x_ref, w1_ref, b1_ref, w2_ref, b2_ref, w3_ref, b3_ref, out_ref):
    # x: (bb, in_dim) f32     w1: (in_dim, 128) bf16   b1: (1, 128) f32
    # w2: (128, 128) bf16     b2: (1, 128) f32
    # w3: (128, 3*G) bf16 slot-blocked                 b3: (1, 3*G) f32
    # out: (bb, 3*G) f32 probabilities, columns [slot0 | slot1 | slot2]
    compute_dtype = w1_ref.dtype
    x = x_ref[...].astype(compute_dtype)  # in-kernel cast; no wrapper HBM pass
    h1 = jnp.maximum(
        jnp.dot(x, w1_ref[...], preferred_element_type=jnp.float32)
        + b1_ref[...],
        0.0,
    )
    h2 = jnp.maximum(
        jnp.dot(h1.astype(compute_dtype), w2_ref[...],
                preferred_element_type=jnp.float32)
        + b2_ref[...],
        0.0,
    )
    logits = (
        jnp.dot(h2.astype(compute_dtype), w3_ref[...],
                preferred_element_type=jnp.float32)
        + b3_ref[...]
    )

    g = out_ref.shape[-1] // ACTION_VALUES
    l0 = logits[:, 0:g]
    l1 = logits[:, g:2 * g]
    l2 = logits[:, 2 * g:3 * g]
    m = jnp.maximum(jnp.maximum(l0, l1), l2)
    e0 = jnp.exp(l0 - m)
    e1 = jnp.exp(l1 - m)
    e2 = jnp.exp(l2 - m)
    # Exact division: rows sum to 1 to f32 precision (approx reciprocal was
    # the correctness failure); divide cost is hidden by the step overhead.
    inv = 1.0 / (e0 + e1 + e2)
    # Direct slice stores (no lane-axis concatenate before the store).
    out_ref[:, 0:g] = e0 * inv
    out_ref[:, g:2 * g] = e1 * inv
    out_ref[:, 2 * g:3 * g] = e2 * inv


def init_params(key, n_drones, n_obs_per_drone, n_actions_per_drone):
    """PyTorch-Linear-style init: U(-1/sqrt(fan_in), 1/sqrt(fan_in)). f32 master params."""
    input_dim = n_drones * n_obs_per_drone
    output_dim = n_drones * n_actions_per_drone * ACTION_VALUES
    dims = [(input_dim, HIDDEN), (HIDDEN, HIDDEN), (HIDDEN, output_dim)]
    params = []
    for fan_in, fan_out in dims:
        key, kw, kb = jax.random.split(key, 3)
        bound = 1.0 / jnp.sqrt(float(fan_in))
        w = jax.random.uniform(kw, (fan_in, fan_out), jnp.float32, -bound, bound)
        b = jax.random.uniform(kb, (fan_out,), jnp.float32, -bound, bound)
        params += [w, b]
    return tuple(params)


def prepare_params(params, compute_dtype=jnp.bfloat16):
    """One-time re-layout of layer-3 into slot-blocked form + matmul-operand casts.

    Runs once at init, NOT in the forward hot path.
    """
    w1, b1, w2, b2, w3, b3 = params
    # Column j of original W3 maps to (drone, action, value) with value = j % 3;
    # group all value-v columns contiguously -> (128, 3*G).
    w3_blocked = jnp.concatenate(
        [w3[:, v::ACTION_VALUES] for v in range(ACTION_VALUES)], axis=1)
    b3_blocked = jnp.concatenate(
        [b3[v::ACTION_VALUES] for v in range(ACTION_VALUES)], axis=0)
    return (
        w1.astype(compute_dtype),
        b1[None, :].astype(jnp.float32),
        w2.astype(compute_dtype),
        b2[None, :].astype(jnp.float32),
        w3_blocked.astype(compute_dtype),
        b3_blocked[None, :].astype(jnp.float32),
    )


def dqn_forward(x, prepared_params, n_drones, n_actions_per_drone, *, block_b=2048):
    """Pallas DQN forward. Returns (B, n_drones, n_actions_per_drone, 3) probabilities."""
    w1, b1, w2, b2, w3b, b3b = prepared_params
    input_dim = w1.shape[0]
    g = n_drones * n_actions_per_drone
    out_dim = ACTION_VALUES * g

    # matches x.view(-1, n_drones * n_obs_per_drone); NO cast, NO pad here —
    # both would be standalone XLA ops doing an extra HBM pass over x.
    x2 = x.reshape(-1, input_dim)
    batch = x2.shape[0]

    # Batch tile: big (amortize ~0.35us/step), but split into >=2 tiles when the
    # batch is large enough so v7x's 2 TensorCores both get work.
    if batch > 16:
        bb = min(block_b, _round_up(pl.cdiv(batch, 2), 16))
    else:
        bb = _round_up(max(batch, 1), 8)
    grid = (pl.cdiv(batch, bb),)  # final block may be partial; Pallas masks it

    out = pl.pallas_call(
        dqn_kernel,
        out_shape=jax.ShapeDtypeStruct((batch, out_dim), jnp.float32),
        grid_spec=pltpu.PrefetchScalarGridSpec(
            num_scalar_prefetch=0,
            grid=grid,
            in_specs=[
                pl.BlockSpec((bb, input_dim), lambda i: (i, 0)),      # x (tiled, f32)
                pl.BlockSpec((input_dim, HIDDEN), lambda i: (0, 0)),  # w1 (resident)
                pl.BlockSpec((1, HIDDEN), lambda i: (0, 0)),          # b1
                pl.BlockSpec((HIDDEN, HIDDEN), lambda i: (0, 0)),     # w2
                pl.BlockSpec((1, HIDDEN), lambda i: (0, 0)),          # b2
                pl.BlockSpec((HIDDEN, out_dim), lambda i: (0, 0)),    # w3 (blocked)
                pl.BlockSpec((1, out_dim), lambda i: (0, 0)),         # b3 (blocked)
            ],
            out_specs=pl.BlockSpec((bb, out_dim), lambda i: (i, 0)),
        ),
        compiler_params=pltpu.CompilerParams(
            dimension_semantics=("parallel",),  # shard batch tiles across v7x's 2 TCs
        ),
    )(x2, w1, b1, w2, b2, w3b, b3b)

    # Columns are [slot0(G) | slot1(G) | slot2(G)], within-slot order (drone, action);
    # rearrange to (B, n_drones, n_actions, 3) to match the PyTorch module output.
    out = out.reshape(batch, ACTION_VALUES, n_drones, n_actions_per_drone)
    return jnp.transpose(out, (0, 2, 3, 1))


def dqn_reference(x, params, n_drones, n_actions_per_drone,
                  compute_dtype=jnp.bfloat16):
    """Pure-JAX reference with the same bf16-operand / f32-accumulate matmuls."""
    w1, b1, w2, b2, w3, b3 = params
    x2 = x.reshape(-1, w1.shape[0]).astype(compute_dtype)
    h1 = jax.nn.relu(
        jnp.dot(x2, w1.astype(compute_dtype), preferred_element_type=jnp.float32) + b1)
    h2 = jax.nn.relu(
        jnp.dot(h1.astype(compute_dtype), w2.astype(compute_dtype),
                preferred_element_type=jnp.float32) + b2)
    logits = jnp.dot(h2.astype(compute_dtype), w3.astype(compute_dtype),
                     preferred_element_type=jnp.float32) + b3
    logits = logits.reshape(-1, n_drones, n_actions_per_drone, ACTION_VALUES)
    return jax.nn.softmax(logits, axis=-1)


if __name__ == "__main__":
    n_drones, n_obs_per_drone, n_actions_per_drone = 4, 6, 2
    batch = 2

    key = jax.random.PRNGKey(0)
    key, kx = jax.random.split(key)
    # input as (batch, n_drones, n_obs) — forward flattens it, matching x.view(...)
    x = jax.random.normal(kx, (batch, n_drones, n_obs_per_drone), jnp.float32)
    params = init_params(key, n_drones, n_obs_per_drone, n_actions_per_drone)
    prepared = prepare_params(params, compute_dtype=jnp.bfloat16)

    out = dqn_forward(x, prepared, n_drones, n_actions_per_drone)
    out = jax.block_until_ready(out)

    ref = dqn_reference(x, params, n_drones, n_actions_per_drone)
    assert out.shape == (batch, n_drones, n_actions_per_drone, ACTION_VALUES)
    # rows are probability distributions (exact division -> f32-precise)
    assert jnp.allclose(jnp.sum(out, axis=-1), 1.0, atol=1e-3)
    # bf16 matmuls on both sides => moderate tolerance vs matched reference
    assert jnp.allclose(out, ref, atol=1e-2, rtol=1e-2), "mismatch vs JAX reference"
    print("KERNEL_OK")
</pallas_src>

<mosaic_0001>
module attributes {stable_mosaic.version = 11 : i64} {
  func.func @dqn_kernel(%arg0: i32, %arg1: memref<8x24xf32, #tpu.memory_space<vmem>>, %arg2: memref<24x128xbf16, #tpu.memory_space<vmem>>, %arg3: memref<1x128xf32, #tpu.memory_space<vmem>>, %arg4: memref<128x128xbf16, #tpu.memory_space<vmem>>, %arg5: memref<1x128xf32, #tpu.memory_space<vmem>>, %arg6: memref<128x24xbf16, #tpu.memory_space<vmem>>, %arg7: memref<1x24xf32, #tpu.memory_space<vmem>>, %arg8: memref<8x24xf32, #tpu.memory_space<vmem>>) attributes {dimension_semantics = [#tpu.dimension_semantics<parallel>], iteration_bounds = array<i64: 1>, scalar_prefetch = 0 : i64, scratch_operands = 0 : i64, tpu.core_type = #tpu.core_type<tc>, window_params = [{transform_indices = @transform_0, window_bounds = array<i64: 8, 24>}, {pipeline_mode = #tpu.pipeline_mode<synchronous>, transform_indices = @transform_1, window_bounds = array<i64: 24, 128>}, {pipeline_mode = #tpu.pipeline_mode<synchronous>, transform_indices = @transform_2, window_bounds = array<i64: 1, 128>}, {pipeline_mode = #tpu.pipeline_mode<synchronous>, transform_indices = @transform_3, window_bounds = array<i64: 128, 128>}, {pipeline_mode = #tpu.pipeline_mode<synchronous>, transform_indices = @transform_4, window_bounds = array<i64: 1, 128>}, {pipeline_mode = #tpu.pipeline_mode<synchronous>, transform_indices = @transform_5, window_bounds = array<i64: 128, 24>}, {pipeline_mode = #tpu.pipeline_mode<synchronous>, transform_indices = @transform_6, window_bounds = array<i64: 1, 24>}, {transform_indices = @transform_7, window_bounds = array<i64: 8, 24>}]} {
    %c0 = arith.constant 0 : index
    %c0_0 = arith.constant 0 : index
    %0 = vector.load %arg1[%c0, %c0_0] : memref<8x24xf32, #tpu.memory_space<vmem>>, vector<8x24xf32>
    %1 = arith.truncf %0 : vector<8x24xf32> to vector<8x24xbf16>
    %c0_1 = arith.constant 0 : index
    %c0_2 = arith.constant 0 : index
    %2 = vector.load %arg2[%c0_1, %c0_2] : memref<24x128xbf16, #tpu.memory_space<vmem>>, vector<24x128xbf16>
    %cst = arith.constant dense<0.000000e+00> : vector<8x128xf32>
    %3 = tpu.matmul %1, %2, %cst {dimension_numbers = #tpu.dot_dimension_numbers<[1], [0], [0], [1], [0, 0, 1, 1], [], []>} : vector<8x24xbf16>, vector<24x128xbf16>, vector<8x128xf32> -> vector<8x128xf32>
    %c0_3 = arith.constant 0 : index
    %c0_4 = arith.constant 0 : index
    %4 = vector.load %arg3[%c0_3, %c0_4] : memref<1x128xf32, #tpu.memory_space<vmem>>, vector<1x128xf32>
    %5 = vector.broadcast %4 : vector<1x128xf32> to vector<8x128xf32>
    %6 = arith.addf %3, %5 : vector<8x128xf32>
    %cst_5 = arith.constant 0.000000e+00 : f32
    %7 = vector.broadcast %cst_5 : f32 to vector<8x128xf32>
    %8 = arith.maximumf %6, %7 : vector<8x128xf32>
    %9 = arith.truncf %8 : vector<8x128xf32> to vector<8x128xbf16>
    %c0_6 = arith.constant 0 : index
    %c0_7 = arith.constant 0 : index
    %10 = vector.load %arg4[%c0_6, %c0_7] : memref<128x128xbf16, #tpu.memory_space<vmem>>, vector<128x128xbf16>
    %cst_8 = arith.constant dense<0.000000e+00> : vector<8x128xf32>
    %11 = tpu.matmul %9, %10, %cst_8 {dimension_numbers = #tpu.dot_dimension_numbers<[1], [0], [0], [1], [0, 0, 1, 1], [], []>} : vector<8x128xbf16>, vector<128x128xbf16>, vector<8x128xf32> -> vector<8x128xf32>
    %c0_9 = arith.constant 0 : index
    %c0_10 = arith.constant 0 : index
    %12 = vector.load %arg5[%c0_9, %c0_10] : memref<1x128xf32, #tpu.memory_space<vmem>>, vector<1x128xf32>
    %13 = vector.broadcast %12 : vector<1x128xf32> to vector<8x128xf32>
    %14 = arith.addf %11, %13 : vector<8x128xf32>
    %cst_11 = arith.constant 0.000000e+00 : f32
    %15 = vector.broadcast %cst_11 : f32 to vector<8x128xf32>
    %16 = arith.maximumf %14, %15 : vector<8x128xf32>
    %17 = arith.truncf %16 : vector<8x128xf32> to vector<8x128xbf16>
    %c0_12 = arith.constant 0 : index
    %c0_13 = arith.constant 0 : index
    %18 = vector.load %arg6[%c0_12, %c0_13] : memref<128x24xbf16, #tpu.memory_space<vmem>>, vector<128x24xbf16>
    %cst_14 = arith.constant dense<0.000000e+00> : vector<8x24xf32>
    %19 = tpu.matmul %17, %18, %cst_14 {dimension_numbers = #tpu.dot_dimension_numbers<[1], [0], [0], [1], [0, 0, 1, 1], [], []>} : vector<8x128xbf16>, vector<128x24xbf16>, vector<8x24xf32> -> vector<8x24xf32>
    %c0_15 = arith.constant 0 : index
    %c0_16 = arith.constant 0 : index
    %20 = vector.load %arg7[%c0_15, %c0_16] : memref<1x24xf32, #tpu.memory_space<vmem>>, vector<1x24xf32>
    %21 = vector.broadcast %20 : vector<1x24xf32> to vector<8x24xf32>
    %22 = arith.addf %19, %21 : vector<8x24xf32>
    %23 = vector.extract_strided_slice %22 {offsets = [0, 0], sizes = [8, 8], strides = [1, 1]} : vector<8x24xf32> to vector<8x8xf32>
    %24 = vector.extract_strided_slice %22 {offsets = [0, 8], sizes = [8, 8], strides = [1, 1]} : vector<8x24xf32> to vector<8x8xf32>
    %25 = vector.extract_strided_slice %22 {offsets = [0, 16], sizes = [8, 8], strides = [1, 1]} : vector<8x24xf32> to vector<8x8xf32>
    %26 = arith.maximumf %23, %24 : vector<8x8xf32>
    %27 = arith.maximumf %26, %25 : vector<8x8xf32>
    %28 = arith.subf %23, %27 : vector<8x8xf32>
    %29 = math.exp %28 : vector<8x8xf32>
    %30 = arith.subf %24, %27 : vector<8x8xf32>
    %31 = math.exp %30 : vector<8x8xf32>
    %32 = arith.subf %25, %27 : vector<8x8xf32>
    %33 = math.exp %32 : vector<8x8xf32>
    %34 = arith.addf %29, %31 : vector<8x8xf32>
    %35 = arith.addf %34, %33 : vector<8x8xf32>
    %cst_17 = arith.constant 1.000000e+00 : f32
    %36 = vector.broadcast %cst_17 : f32 to vector<8x8xf32>
    %37 = arith.divf %36, %35 : vector<8x8xf32>
    %38 = arith.mulf %29, %37 : vector<8x8xf32>
    %c0_18 = arith.constant 0 : index
    %c0_19 = arith.constant 0 : index
    %39 = vector.load %arg8[%c0_18, %c0_19] : memref<8x24xf32, #tpu.memory_space<vmem>>, vector<8x8xf32>
    tpu.vector_store %arg8[%c0_18, %c0_19], %38 {strides = array<i32>} : memref<8x24xf32, #tpu.memory_space<vmem>>, vector<8x8xf32>,
    %40 = arith.mulf %31, %37 : vector<8x8xf32>
    %c0_20 = arith.constant 0 : index
    %c8 = arith.constant 8 : index
    %41 = vector.load %arg8[%c0_20, %c8] : memref<8x24xf32, #tpu.memory_space<vmem>>, vector<8x8xf32>
    tpu.vector_store %arg8[%c0_20, %c8], %40 {strides = array<i32>} : memref<8x24xf32, #tpu.memory_space<vmem>>, vector<8x8xf32>,
    %42 = arith.mulf %33, %37 : vector<8x8xf32>
    %c0_21 = arith.constant 0 : index
    %c16 = arith.constant 16 : index
    %43 = vector.load %arg8[%c0_21, %c16] : memref<8x24xf32, #tpu.memory_space<vmem>>, vector<8x8xf32>
    tpu.vector_store %arg8[%c0_21, %c16], %42 {strides = array<i32>} : memref<8x24xf32, #tpu.memory_space<vmem>>, vector<8x8xf32>,
    return
  }
  func.func @transform_0(%arg0: i32) -> (i32, i32) {
    %c0_i32 = arith.constant 0 : i32
    %c0_i32_0 = arith.constant 0 : i32
    return %arg0, %c0_i32 : i32, i32
  }
  func.func @transform_1(%arg0: i32) -> (i32, i32) {
    %c0_i32 = arith.constant 0 : i32
    %c0_i32_0 = arith.constant 0 : i32
    %c0_i32_1 = arith.constant 0 : i32
    return %c0_i32, %c0_i32_0 : i32, i32
  }
  func.func @transform_2(%arg0: i32) -> (i32, i32) {
    %c0_i32 = arith.constant 0 : i32
    %c0_i32_0 = arith.constant 0 : i32
    %c0_i32_1 = arith.constant 0 : i32
    return %c0_i32, %c0_i32_0 : i32, i32
  }
  func.func @transform_3(%arg0: i32) -> (i32, i32) {
    %c0_i32 = arith.constant 0 : i32
    %c0_i32_0 = arith.constant 0 : i32
    %c0_i32_1 = arith.constant 0 : i32
    return %c0_i32, %c0_i32_0 : i32, i32
  }
  func.func @transform_4(%arg0: i32) -> (i32, i32) {
    %c0_i32 = arith.constant 0 : i32
    %c0_i32_0 = arith.constant 0 : i32
    %c0_i32_1 = arith.constant 0 : i32
    return %c0_i32, %c0_i32_0 : i32, i32
  }
  func.func @transform_5(%arg0: i32) -> (i32, i32) {
    %c0_i32 = arith.constant 0 : i32
    %c0_i32_0 = arith.constant 0 : i32
    %c0_i32_1 = arith.constant 0 : i32
    return %c0_i32, %c0_i32_0 : i32, i32
  }
  func.func @transform_6(%arg0: i32) -> (i32, i32) {
    %c0_i32 = arith.constant 0 : i32
    %c0_i32_0 = arith.constant 0 : i32
    %c0_i32_1 = arith.constant 0 : i32
    return %c0_i32, %c0_i32_0 : i32, i32
  }
  func.func @transform_7(%arg0: i32) -> (i32, i32) {
    %c0_i32 = arith.constant 0 : i32
    %c0_i32_0 = arith.constant 0 : i32
    return %arg0, %c0_i32 : i32, i32
  }
}

</mosaic_0001>

<llo_original>
// kernel: tpu_custom_call.1
$region0: #{tpu_custom_call.1}
  #allocation0 [shape = 'u32[]', space=smem, size = 0x4, offset = 0x4, fixed_abs, tag = 'smem constant byte address 0x4 - core index']
  #allocation1 [shape = 'u32[144,128]{1,0:T(1,128)}', space=vmem, size = 0x12000, scoped, tag = 'internal scratch']
  %s0 = inlined_call_operand.vmem [shape: f32[2,24], index: 0, kind: input, shape index: {}]
  %s1 = inlined_call_operand.vmem [shape: bf16[24,128], index: 1, kind: input, shape index: {}]
  %s2 = inlined_call_operand.vmem [shape: f32[1,128], index: 2, kind: input, shape index: {}]
  %s3 = inlined_call_operand.vmem [shape: bf16[128,128], index: 3, kind: input, shape index: {}]
  %s4 = inlined_call_operand.vmem [shape: f32[1,128], index: 4, kind: input, shape index: {}]
  %s5 = inlined_call_operand.vmem [shape: bf16[128,24], index: 5, kind: input, shape index: {}]
  %s6 = inlined_call_operand.vmem [shape: f32[1,24], index: 6, kind: input, shape index: {}]
  %s7 = inlined_call_operand.hbm [shape: f32[2,24], index: 7, kind: output, shape index: {}]
  %s8 = sld [smem:[#allocation0]]
  $region38: #{tpu_custom_call.1} parent=0
    _
  %s10 = ssub.s32 1, %s8
  %s11 = scalar_select 0, %s10, %s8
  $region1: #{tpu_custom_call.1} parent=0
    #allocation2 [shape = 'u8[4096]{0}', space=vmem, size = 0x1000, scoped, tag = 'output window, operand 0, single buffered']
    #allocation3 [shape = 's32[1]{0}', space=sflag, size = 0x4, scoped, tag = 'scoped memory for tpu_custom_call.1']
    %12 = vsyncpa [#allocation3], 0
    // Predicated region
    $region2: #{tpu_custom_call.1} parent=1 // pred_check
      _
    $region3: #{tpu_custom_call.1} parent=1 // pred_check_branch
      %14 = sbr.rel (0) target = $region5
    $region4: #{tpu_custom_call.1} parent=1 // pred_region
      _
    $region5: #{tpu_custom_call.1} parent=1 // pred_fallthru
      _
    // Predicated region
    $region6: #{tpu_custom_call.1} parent=1 // pred_check
      _
    $region7: #{tpu_custom_call.1} parent=1 // pred_check_branch
      %16 = sbr.rel (0) target = $region9
    $region8: #{tpu_custom_call.1} parent=1 // pred_region
      _
    $region9: #{tpu_custom_call.1} parent=1 // pred_fallthru
      _
    // Predicated region
    $region10: #{tpu_custom_call.1} parent=1 // pred_check
      _
    $region11: #{tpu_custom_call.1} parent=1 // pred_check_branch
      %18 = sbr.rel (0) target = $region13
    $region12: #{tpu_custom_call.1} parent=1 // pred_region
      _
    $region13: #{tpu_custom_call.1} parent=1 // pred_fallthru
      _
    // Predicated region
    $region14: #{tpu_custom_call.1} parent=1 // pred_check
      _
    $region15: #{tpu_custom_call.1} parent=1 // pred_check_branch
      %20 = sbr.rel (0) target = $region17
    $region16: #{tpu_custom_call.1} parent=1 // pred_region
      _
    $region17: #{tpu_custom_call.1} parent=1 // pred_fallthru
      _
    // Predicated region
    $region18: #{tpu_custom_call.1} parent=1 // pred_check
      _
    $region19: #{tpu_custom_call.1} parent=1 // pred_check_branch
      %22 = sbr.rel (0) target = $region21
    $region20: #{tpu_custom_call.1} parent=1 // pred_region
      _
    $region21: #{tpu_custom_call.1} parent=1 // pred_fallthru
      _
    // Predicated region
    $region22: #{tpu_custom_call.1} parent=1 // pred_check
      _
    $region23: #{tpu_custom_call.1} parent=1 // pred_check_branch
      %24 = sbr.rel (0) target = $region25
    $region24: #{tpu_custom_call.1} parent=1 // pred_region
      _
    $region25: #{tpu_custom_call.1} parent=1 // pred_fallthru
      _
    // Predicated region
    $region26: #{tpu_custom_call.1} parent=1 // pred_check
      _
    $region27: #{tpu_custom_call.1} parent=1 // pred_check_branch
      %26 = sbr.rel (0) target = $region29
    $region28: #{tpu_custom_call.1} parent=1 // pred_region
      _
    $region29: #{tpu_custom_call.1} parent=1 // pred_fallthru
      _
    %v28 = vld [vmem:[%s0] sm:$0xff]
    %v29 = vpack.c.bf16 %v28, %v28
    %v30 = vld [vmem:[%s1] sm:$0xf]
    %v31 = vld [vmem:[%s1 + $0x4] sm:$0xf]
    %v32 = vld [vmem:[%s1 + $0x8] sm:$0xf]
    %v33 = vld [vmem:[%s2] sm:$0x1]
    %v35 = vlaneseq
    %v36 = vshrl.u32 %v35, 7
    %v37 = vsub.s32 0, %v36
    %v38 = vrot.slane %v33, %v37
    %v43 = vunpack.c.l.b16 %v30
    %v44 = vunpack.c.l.b16 %v31
    %v45 = vunpack.c.l.b16 %v32
    %v46 = vpack.c.b16 %v44, %v43
    %v47 = vpack.c.b16 %v45, %v45
    %vm49 = vcmask 195584
    %v51 = vsel %vm49, %v29, 0
    %vm53 = vcmask 1043456
    %v55 = vsel %vm53, %v47, 0
    %57 = vmatprep.subr.bf16.mxu0 0
    %58 = vmatpush1.bf16.msra.mxu0 %v46
    %59 = vmatprep.subr.bf16.mxu0 0
    %60 = vmatpush1.bf16.msra.mxu0 %v55
    %61 = vmatprep.subr.bf16.mxu0 0
    %62 = vmatpush1.bf16.msra.mxu0 0
    %63 = vmatprep.subr.bf16.mxu0 0
    %64 = vmatpush1.bf16.msra.mxu0 0
    %65 = vmatprep.subr.bf16.mxu0 0
    %66 = vmatpush1.bf16.msra.mxu0 0
    %67 = vmatprep.subr.bf16.mxu0 0
    %68 = vmatpush1.bf16.msra.mxu0 0
    %69 = vmatprep.subr.bf16.mxu0 0
    %70 = vmatpush1.bf16.msra.mxu0 0
    %71 = vmatprep.subr.bf16.mxu0 0
    %72 = vmatpush1.bf16.msra.mxu0 0
    %73 = vmatprep.subr.bf16.mxu0 0
    %74 = vmatpush1.bf16.msra.mxu0 0
    %75 = vmatprep.subr.bf16.mxu0 0
    %76 = vmatpush1.bf16.msra.mxu0 0
    %77 = vmatprep.subr.bf16.mxu0 0
    %78 = vmatpush1.bf16.msra.mxu0 0
    %79 = vmatprep.subr.bf16.mxu0 0
    %80 = vmatpush1.bf16.msra.mxu0 0
    %81 = vmatprep.subr.bf16.mxu0 0
    %82 = vmatpush1.bf16.msra.mxu0 0
    %83 = vmatprep.subr.bf16.mxu0 0
    %84 = vmatpush1.bf16.msra.mxu0 0
    %85 = vmatprep.subr.bf16.mxu0 0
    %86 = vmatpush1.bf16.msra.mxu0 0
    %87 = vmatprep.subr.bf16.mxu0 0
    %88 = vmatpush1.bf16.msra.mxu0 0
    %89 = vmatprep.mubr.bf16.mxu0 0
    %90 = vmatmul.mubr.bf16.gmra.mrb[0].mxu0 %v51
    %v91 = vpop.f32.mrb[0].mxu0
    %v92 = vadd.f32 %v38, %v91
    %v93 = vpop.f32.mrb[0].mxu0
    %v94 = vpop.f32.mrb[0].mxu0
    %v95 = vpop.f32.mrb[0].mxu0
    %96 = vdwg.mxu0
    %v97 = vmax.f32 %v92, 0.0
    %v98 = vpack.c.bf16 %v97, %v97
    %v99 = vld [vmem:[%s3] sm:$0xf]
    %v100 = vld [vmem:[%s3 + $0x4] sm:$0xf]
    %v101 = vld [vmem:[%s3 + $0x8] sm:$0xf]
    %v102 = vld [vmem:[%s3 + $0xc] sm:$0xf]
    %v103 = vld [vmem:[%s3 + $0x10] sm:$0xf]
    %v104 = vld [vmem:[%s3 + $0x14] sm:$0xf]
    %v105 = vld [vmem:[%s3 + $0x18] sm:$0xf]
    %v106 = vld [vmem:[%s3 + $0x1c] sm:$0xf]
    %v107 = vld [vmem:[%s3 + $0x20] sm:$0xf]
    %v108 = vld [vmem:[%s3 + $0x24] sm:$0xf]
    %v109 = vld [vmem:[%s3 + $0x28] sm:$0xf]
    %v110 = vld [vmem:[%s3 + $0x2c] sm:$0xf]
    %v111 = vld [vmem:[%s3 + $0x30] sm:$0xf]
    %v112 = vld [vmem:[%s3 + $0x34] sm:$0xf]
    %v113 = vld [vmem:[%s3 + $0x38] sm:$0xf]
    %v114 = vld [vmem:[%s3 + $0x3c] sm:$0xf]
    %v115 = vld [vmem:[%s4] sm:$0x1]
    %v117 = vlaneseq
    %v118 = vshrl.u32 %v117, 7
    %v119 = vsub.s32 0, %v118
    %v120 = vrot.slane %v115, %v119
    %v138 = vunpack.c.l.b16 %v99
    %v139 = vunpack.c.l.b16 %v100
    %v140 = vunpack.c.l.b16 %v101
    %v141 = vunpack.c.l.b16 %v102
    %v142 = vunpack.c.l.b16 %v103
    %v143 = vunpack.c.l.b16 %v104
    %v144 = vunpack.c.l.b16 %v105
    %v145 = vunpack.c.l.b16 %v106
    %v146 = vunpack.c.l.b16 %v107
    %v147 = vunpack.c.l.b16 %v108
    %v148 = vunpack.c.l.b16 %v109
    %v149 = vunpack.c.l.b16 %v110
    %v150 = vunpack.c.l.b16 %v111
    %v151 = vunpack.c.l.b16 %v112
    %v152 = vunpack.c.l.b16 %v113
    %v153 = vunpack.c.l.b16 %v114
    %v154 = vpack.c.b16 %v139, %v138
    %v155 = vpack.c.b16 %v141, %v140
    %v156 = vpack.c.b16 %v143, %v142
    %v157 = vpack.c.b16 %v145, %v144
    %v158 = vpack.c.b16 %v147, %v146
    %v159 = vpack.c.b16 %v149, %v148
    %v160 = vpack.c.b16 %v151, %v150
    %v161 = vpack.c.b16 %v153, %v152
    %170 = vmatprep.subr.bf16.mxu0 0
    %171 = vmatpush1.bf16.msra.mxu0 %v154
    %172 = vmatprep.subr.bf16.mxu0 0
    %173 = vmatpush1.bf16.msra.mxu0 %v155
    %174 = vmatprep.subr.bf16.mxu0 0
    %175 = vmatpush1.bf16.msra.mxu0 %v156
    %176 = vmatprep.subr.bf16.mxu0 0
    %177 = vmatpush1.bf16.msra.mxu0 %v157
    %178 = vmatprep.subr.bf16.mxu0 0
    %179 = vmatpush1.bf16.msra.mxu0 %v158
    %180 = vmatprep.subr.bf16.mxu0 0
    %181 = vmatpush1.bf16.msra.mxu0 %v159
    %182 = vmatprep.subr.bf16.mxu0 0
    %183 = vmatpush1.bf16.msra.mxu0 %v160
    %184 = vmatprep.subr.bf16.mxu0 0
    %185 = vmatpush1.bf16.msra.mxu0 %v161
    %186 = vmatprep.subr.bf16.mxu0 0
    %187 = vmatpush1.bf16.msra.mxu0 0
    %188 = vmatprep.subr.bf16.mxu0 0
    %189 = vmatpush1.bf16.msra.mxu0 0
    %190 = vmatprep.subr.bf16.mxu0 0
    %191 = vmatpush1.bf16.msra.mxu0 0
    %192 = vmatprep.subr.bf16.mxu0 0
    %193 = vmatpush1.bf16.msra.mxu0 0
    %194 = vmatprep.subr.bf16.mxu0 0
    %195 = vmatpush1.bf16.msra.mxu0 0
    %196 = vmatprep.subr.bf16.mxu0 0
    %197 = vmatpush1.bf16.msra.mxu0 0
    %198 = vmatprep.subr.bf16.mxu0 0
    %199 = vmatpush1.bf16.msra.mxu0 0
    %200 = vmatprep.subr.bf16.mxu0 0
    %201 = vmatpush1.bf16.msra.mxu0 0
    %202 = vmatprep.mubr.bf16.mxu0 0
    %203 = vmatmul.mubr.bf16.gmra.mrb[0].mxu0 %v98
    %v204 = vpop.f32.mrb[0].mxu0
    %v205 = vadd.f32 %v120, %v204
    %v206 = vpop.f32.mrb[0].mxu0
    %v207 = vpop.f32.mrb[0].mxu0
    %v208 = vpop.f32.mrb[0].mxu0
    %209 = vdwg.mxu0
    %v210 = vmax.f32 %v205, 0.0
    %v211 = vpack.c.bf16 %v210, %v210
    %v212 = vld [vmem:[%s5] sm:$0xf]
    %v213 = vld [vmem:[%s5 + $0x4] sm:$0xf]
    %v214 = vld [vmem:[%s5 + $0x8] sm:$0xf]
    %v215 = vld [vmem:[%s5 + $0xc] sm:$0xf]
    %v216 = vld [vmem:[%s5 + $0x10] sm:$0xf]
    %v217 = vld [vmem:[%s5 + $0x14] sm:$0xf]
    %v218 = vld [vmem:[%s5 + $0x18] sm:$0xf]
    %v219 = vld [vmem:[%s5 + $0x1c] sm:$0xf]
    %v220 = vld [vmem:[%s5 + $0x20] sm:$0xf]
    %v221 = vld [vmem:[%s5 + $0x24] sm:$0xf]
    %v222 = vld [vmem:[%s5 + $0x28] sm:$0xf]
    %v223 = vld [vmem:[%s5 + $0x2c] sm:$0xf]
    %v224 = vld [vmem:[%s5 + $0x30] sm:$0xf]
    %v225 = vld [vmem:[%s5 + $0x34] sm:$0xf]
    %v226 = vld [vmem:[%s5 + $0x38] sm:$0xf]
    %v227 = vld [vmem:[%s5 + $0x3c] sm:$0xf]
    %v228 = vld [vmem:[%s6] sm:$0x1]
    %v230 = vlaneseq
    %v231 = vshrl.u32 %v230, 7
    %v232 = vsub.s32 0, %v231
    %v233 = vrot.slane %v228, %v232
    %v251 = vunpack.c.l.b16 %v212
    %v252 = vunpack.c.l.b16 %v213
    %v253 = vunpack.c.l.b16 %v214
    %v254 = vunpack.c.l.b16 %v215
    %v255 = vunpack.c.l.b16 %v216
    %v256 = vunpack.c.l.b16 %v217
    %v257 = vunpack.c.l.b16 %v218
    %v258 = vunpack.c.l.b16 %v219
    %v259 = vunpack.c.l.b16 %v220
    %v260 = vunpack.c.l.b16 %v221
    %v261 = vunpack.c.l.b16 %v222
    %v262 = vunpack.c.l.b16 %v223
    %v263 = vunpack.c.l.b16 %v224
    %v264 = vunpack.c.l.b16 %v225
    %v265 = vunpack.c.l.b16 %v226
    %v266 = vunpack.c.l.b16 %v227
    %v267 = vpack.c.b16 %v252, %v251
    %v268 = vpack.c.b16 %v254, %v253
    %v269 = vpack.c.b16 %v256, %v255
    %v270 = vpack.c.b16 %v258, %v257
    %v271 = vpack.c.b16 %v260, %v259
    %v272 = vpack.c.b16 %v262, %v261
    %v273 = vpack.c.b16 %v264, %v263
    %v274 = vpack.c.b16 %v266, %v265
    %283 = vmatprep.subr.bf16.mxu0 0
    %284 = vmatpush1.bf16.msra.mxu0 %v267
    %285 = vmatprep.subr.bf16.mxu0 0
    %286 = vmatpush1.bf16.msra.mxu0 %v268
    %287 = vmatprep.subr.bf16.mxu0 0
    %288 = vmatpush1.bf16.msra.mxu0 %v269
    %289 = vmatprep.subr.bf16.mxu0 0
    %290 = vmatpush1.bf16.msra.mxu0 %v270
    %291 = vmatprep.subr.bf16.mxu0 0
    %292 = vmatpush1.bf16.msra.mxu0 %v271
    %293 = vmatprep.subr.bf16.mxu0 0
    %294 = vmatpush1.bf16.msra.mxu0 %v272
    %295 = vmatprep.subr.bf16.mxu0 0
    %296 = vmatpush1.bf16.msra.mxu0 %v273
    %297 = vmatprep.subr.bf16.mxu0 0
    %298 = vmatpush1.bf16.msra.mxu0 %v274
    %299 = vmatprep.subr.bf16.mxu0 0
    %300 = vmatpush1.bf16.msra.mxu0 0
    %301 = vmatprep.subr.bf16.mxu0 0
    %302 = vmatpush1.bf16.msra.mxu0 0
    %303 = vmatprep.subr.bf16.mxu0 0
    %304 = vmatpush1.bf16.msra.mxu0 0
    %305 = vmatprep.subr.bf16.mxu0 0
    %306 = vmatpush1.bf16.msra.mxu0 0
    %307 = vmatprep.subr.bf16.mxu0 0
    %308 = vmatpush1.bf16.msra.mxu0 0
    %309 = vmatprep.subr.bf16.mxu0 0
    %310 = vmatpush1.bf16.msra.mxu0 0
    %311 = vmatprep.subr.bf16.mxu0 0
    %312 = vmatpush1.bf16.msra.mxu0 0
    %313 = vmatprep.subr.bf16.mxu0 0
    %314 = vmatpush1.bf16.msra.mxu0 0
    %315 = vmatprep.mubr.bf16.mxu0 0
    %316 = vmatmul.mubr.bf16.gmra.mrb[0].mxu0 %v211
    %v317 = vpop.f32.mrb[0].mxu0
    %v318 = vadd.f32 %v233, %v317
    %v319 = vpop.f32.mrb[0].mxu0
    %v320 = vpop.f32.mrb[0].mxu0
    %v321 = vpop.f32.mrb[0].mxu0
    %322 = vdwg.mxu0
    %324 = vrot.lane.b32.xlu0 %v318, 120
    %v325 = vpop.permute.xlu0 %324
    %v327 = vmax.f32 %v318, %v325
    %328 = vrot.lane.b32.xlu0 %v318, 112
    %v329 = vpop.permute.xlu0 %328
    %v331 = vmax.f32 %v327, %v329
    %v332 = vsub.f32 %v318, %v331
    %v333 = vmul.f32 %v332, 1.442695
    %v334 = vpow.pop %v333
    %336 = vrot.lane.b32.xlu0 %v331, 8
    %v337 = vpop.permute.xlu0 %336
    %v339 = vsub.f32 %v318, %v337
    %v340 = vmul.f32 %v339, 1.442695
    %v341 = vpow.pop %v340
    %342 = vrot.lane.b32.xlu0 %v331, 16
    %v343 = vpop.permute.xlu0 %342
    %v345 = vsub.f32 %v318, %v343
    %v346 = vmul.f32 %v345, 1.442695
    %v347 = vpow.pop %v346
    %349 = vrot.lane.b32.xlu0 %v341, 120
    %v350 = vpop.permute.xlu0 %349
    %v352 = vadd.f32 %v334, %v350
    %354 = vrot.lane.b32.xlu0 %v347, 112
    %v355 = vpop.permute.xlu0 %354
    %v357 = vadd.f32 %v352, %v355
    %v358 = vrcp.pop %v357
    %v359 = vmul.f32 1.0, %v358
    %v360 = vmul.f32 %v334, %v359
    %vm361 = vcmask 64512
    %362 = vst.msk [vmem:[#allocation2] sm:$0xff] %vm361, %v360
    %364 = vrot.lane.b32.xlu0 %v359, 8
    %v365 = vpop.permute.xlu0 %364
    %v367 = vmul.f32 %v341, %v365
    %vm368 = vcmask 130112
    %369 = vst.msk [vmem:[#allocation2] sm:$0xff] %vm368, %v367
    %370 = vrot.lane.b32.xlu0 %v359, 16
    %v371 = vpop.permute.xlu0 %370
    %v373 = vmul.f32 %v347, %v371
    %vm374 = vcmask 195712
    %375 = vst.msk [vmem:[#allocation2] sm:$0xff] %vm374, %v373
    // Predicated region
    $region30: #{tpu_custom_call.1} parent=1 // pred_check
      _
    $region31: #{tpu_custom_call.1} parent=1 // pred_check_branch
      %377 = sbr.rel (0) target = $region33
    $region32: #{tpu_custom_call.1} parent=1 // pred_region
      %s379 = ssub.s32 128, 32
      %380 = vsyncadd [#allocation3], %s379
      %s381 = sshll.u32 [#allocation2], 4
      %s382 = int_to_ptr.vmem [resolvable:$true] %s381
      %387 = dma.vmem_to_hbm [thread:$0]  %s382, 32, %s7, [#allocation3], 32, 32, 2
    $region33: #{tpu_custom_call.1} parent=1 // pred_fallthru
      _
    // Predicated region
    $region34: #{tpu_custom_call.1} parent=1 // pred_check
      _
    $region35: #{tpu_custom_call.1} parent=1 // pred_check_branch
      %389 = sbr.rel (0) target = $region37
    $region36: #{tpu_custom_call.1} parent=1 // pred_region
      %390 = dma.done [#allocation3], 128
    $region37: #{tpu_custom_call.1} parent=1 // pred_fallthru
      _
    %391 = vsyncpa [#allocation3], 1

</llo_original>
